<compile_context>
chip_gen: v6e
topology: v6e:2x2x1
jax: 0.10.0
libtpu: 0.0.40
codegen_flags: <defaults>
</compile_context>

<pallas_src>
import math
import functools

import jax
import jax.numpy as jnp
from jax import lax
from jax.experimental import pallas as pl
from jax.experimental.pallas import tpu as pltpu


def _round_up(x, m):
    return (x + m - 1) // m * m


# ---------------------------------------------------------------------------
# Pass 1: accumulate S = Q^T K over N-tiles, then atten = softmax(S, axis=0).
# The (dim_pad, dim_pad) output block is resident across the reduction grid.
# ---------------------------------------------------------------------------
def _qk_softmax_kernel(x_ref, wqk_ref, bqk_ref, atten_ref, *,
                       dim_k, dim_pad, n_rows, tile_n, norm_fact):
    i = pl.program_id(0)

    @pl.when(i == 0)
    def _init():
        atten_ref[...] = jnp.zeros_like(atten_ref)

    # Fused Q|K projection: one MXU matmul (bf16 inputs, f32 accumulation).
    qk = jnp.dot(x_ref[...], wqk_ref[...],
                 preferred_element_type=jnp.float32) + bqk_ref[...]

    # Zero rows past the true N (zero-padded x rows would still pick up bias).
    row = i * tile_n + lax.broadcasted_iota(jnp.int32, (tile_n, 1), 0)
    qk = jnp.where(row < n_rows, qk, 0.0)

    q = qk[:, :dim_pad]          # slices at 128-lane boundaries -> free
    k = qk[:, dim_pad:]

    # S += Q^T K : contract the row axis directly on the MXU (no XLU transpose).
    atten_ref[...] += lax.dot_general(
        q, k, (((0,), (0,)), ((), ())), preferred_element_type=jnp.float32)

    @pl.when(i == pl.num_programs(0) - 1)
    def _finalize():
        s = atten_ref[...] * norm_fact
        # Padded rows must not contribute to the axis=0 softmax.
        rid = lax.broadcasted_iota(jnp.int32, (dim_pad, dim_pad), 0)
        s = jnp.where(rid < dim_k, s, -jnp.inf)
        s_max = jnp.max(s, axis=0, keepdims=True)
        e = jnp.exp(s - s_max)
        denom = jnp.sum(e, axis=0, keepdims=True)
        atten_ref[...] = e * pl.reciprocal(denom, approx=True)


# ---------------------------------------------------------------------------
# Pass 2: per N-tile, V = x @ Wv + bv ; out = V @ atten.  Tiles are independent
# ("parallel" grid axis -> sharded across TensorCores on v7x).
# ---------------------------------------------------------------------------
def _output_kernel(x_ref, wv_ref, bv_ref, atten_ref, o_ref):
    v = jnp.dot(x_ref[...], wv_ref[...],
                preferred_element_type=jnp.float32) + bv_ref[...]
    o_ref[...] = jnp.dot(v, atten_ref[...], preferred_element_type=jnp.float32)


def attention_forward(x, wq, bq, wk, bk, wv, bv, *,
                      tile_n_max=512, param_dtype=jnp.bfloat16):
    """x: (N, in_size); wq/wk: (in_size, dim_k); wv: (in_size, dim_v); biases 1-D.

    Weights are passed pre-transposed (in_size, dim) so the kernel does x @ W.
    MXU inputs are cast to `param_dtype` (bf16 by default); accumulation,
    biases and softmax stay in float32.
    """
    N, in_size = x.shape
    dim_k = wq.shape[1]
    dim_v = wv.shape[1]
    assert dim_v == dim_k, (
        "Attention.forward only type-checks when dim_v == dim_k "
        "(V @ atten with atten of shape (dim_k, dim_k)).")
    norm_fact = 1.0 / math.sqrt(dim_k)

    f32 = jnp.float32
    dim_pad = _round_up(dim_k, 128)                  # lane-dense tiles/stores
    tile_n = min(tile_n_max, _round_up(N, 16))       # bf16 sublane-friendly tiles
    n_pad = _round_up(N, tile_n)
    num_tiles = n_pad // tile_n

    # ---- pad / pack parameters (padded entries are zero) -------------------
    x_p = jnp.zeros((n_pad, in_size), param_dtype).at[:N].set(x.astype(param_dtype))

    wqk = jnp.zeros((in_size, 2 * dim_pad), f32)
    wqk = wqk.at[:, :dim_k].set(wq).at[:, dim_pad:dim_pad + dim_k].set(wk)
    wqk = wqk.astype(param_dtype)
    bqk = jnp.zeros((1, 2 * dim_pad), f32)
    bqk = bqk.at[0, :dim_k].set(bq).at[0, dim_pad:dim_pad + dim_k].set(bk)

    wv_p = jnp.zeros((in_size, dim_pad), f32).at[:, :dim_k].set(wv).astype(param_dtype)
    bv_p = jnp.zeros((1, dim_pad), f32).at[0, :dim_k].set(bv)

    # ---- explicit VMEM budget (keeps headroom on v7x's 64 MiB VMEM) --------
    itemsize = jnp.dtype(param_dtype).itemsize
    vmem_est = (2 * tile_n * in_size * itemsize          # double-buffered x tile
                + 2 * tile_n * dim_pad * 4               # double-buffered out tile
                + in_size * 3 * dim_pad * itemsize       # resident packed weights
                + 3 * dim_pad * 4                        # biases
                + dim_pad * dim_pad * 4)                 # atten / accumulator
    vmem_limit = int(min(48 * 2**20, max(8 * 2**20, 4 * vmem_est)))

    const = lambda i: (0, 0)     # weights/biases/atten: fetched once, VMEM-resident
    tiled = lambda i: (i, 0)     # N-tiled arrays

    # ---- pass 1: atten = softmax(Q^T K / sqrt(dim_k), axis=0) --------------
    atten = pl.pallas_call(
        functools.partial(_qk_softmax_kernel, dim_k=dim_k, dim_pad=dim_pad,
                          n_rows=N, tile_n=tile_n, norm_fact=norm_fact),
        out_shape=jax.ShapeDtypeStruct((dim_pad, dim_pad), f32),
        grid_spec=pltpu.PrefetchScalarGridSpec(
            num_scalar_prefetch=0,
            grid=(num_tiles,),
            in_specs=[pl.BlockSpec((tile_n, in_size), tiled),
                      pl.BlockSpec((in_size, 2 * dim_pad), const),
                      pl.BlockSpec((1, 2 * dim_pad), const)],
            out_specs=pl.BlockSpec((dim_pad, dim_pad), const)),
        compiler_params=pltpu.CompilerParams(
            dimension_semantics=("arbitrary",),      # reduction over N-tiles
            vmem_limit_bytes=vmem_limit),
    )(x_p, wqk, bqk)

    # ---- pass 2: out_tile = (x_tile @ Wv + bv) @ atten ----------------------
    out_p = pl.pallas_call(
        _output_kernel,
        out_shape=jax.ShapeDtypeStruct((n_pad, dim_pad), f32),
        grid_spec=pltpu.PrefetchScalarGridSpec(
            num_scalar_prefetch=0,
            grid=(num_tiles,),
            in_specs=[pl.BlockSpec((tile_n, in_size), tiled),
                      pl.BlockSpec((in_size, dim_pad), const),
                      pl.BlockSpec((1, dim_pad), const),
                      pl.BlockSpec((dim_pad, dim_pad), const)],
            out_specs=pl.BlockSpec((tile_n, dim_pad), tiled)),
        compiler_params=pltpu.CompilerParams(
            dimension_semantics=("parallel",),       # independent output tiles
            vmem_limit_bytes=vmem_limit),
    )(x_p, wv_p, bv_p, atten)

    return out_p[:N, :dim_k]


def _reference(x, wq, bq, wk, bk, wv, bv):
    dim_k = wq.shape[1]
    q = x @ wq + bq
    k = x @ wk + bk
    v = x @ wv + bv
    s = (q.T @ k) * (1.0 / math.sqrt(dim_k))
    atten = jax.nn.softmax(s, axis=0)
    return v @ atten


if __name__ == "__main__":
    # Small shapes consistent with the module: x is (seq, in_size).
    # NOTE: the PyTorch forward only type-checks when dim_v == dim_k.
    N, in_size, dim_k, dim_v = 8, 32, 16, 16

    key = jax.random.PRNGKey(0)
    kx, kq, kbq, kk, kbk, kv, kbv = jax.random.split(key, 7)

    # Deterministic init mimicking torch.nn.Linear default (U(+-1/sqrt(in_size)));
    # weights stored as (in_size, dim).
    bound = 1.0 / math.sqrt(in_size)
    u = lambda k, shape: jax.random.uniform(k, shape, jnp.float32, -bound, bound)

    x = jax.random.normal(kx, (N, in_size), jnp.float32)
    wq, bq = u(kq, (in_size, dim_k)), u(kbq, (dim_k,))
    wk, bk = u(kk, (in_size, dim_k)), u(kbk, (dim_k,))
    wv, bv = u(kv, (in_size, dim_v)), u(kbv, (dim_v,))

    out = attention_forward(x, wq, bq, wk, bk, wv, bv)
    out = jax.block_until_ready(out)

    # Reference computed with the same bf16-rounded MXU inputs (f32 math elsewhere).
    r = lambda a: a.astype(jnp.bfloat16).astype(jnp.float32)
    ref = _reference(r(x), r(wq), bq, r(wk), bk, r(wv), bv)

    assert out.shape == (N, dim_k)
    max_err = float(jnp.max(jnp.abs(out - ref)))
    assert jnp.allclose(out, ref, atol=1e-2, rtol=1e-2), (
        f"mismatch vs reference, max abs err={max_err}")

    print("KERNEL_OK")
</pallas_src>

<mosaic_0001>
module attributes {stable_mosaic.version = 11 : i64} {
  func.func @_qk_softmax_kernel(%arg0: i32, %arg1: memref<16x32xbf16, #tpu.memory_space<vmem>>, %arg2: memref<32x256xbf16, #tpu.memory_space<vmem>>, %arg3: memref<1x256xf32, #tpu.memory_space<vmem>>, %arg4: memref<128x128xf32, #tpu.memory_space<vmem>>) attributes {dimension_semantics = [#tpu.dimension_semantics<arbitrary>], iteration_bounds = array<i64: 1>, scalar_prefetch = 0 : i64, scratch_operands = 0 : i64, tpu.core_type = #tpu.core_type<tc>, window_params = [{transform_indices = @transform_0, window_bounds = array<i64: 16, 32>}, {pipeline_mode = #tpu.pipeline_mode<synchronous>, transform_indices = @transform_1, window_bounds = array<i64: 32, 256>}, {pipeline_mode = #tpu.pipeline_mode<synchronous>, transform_indices = @transform_2, window_bounds = array<i64: 1, 256>}, {pipeline_mode = #tpu.pipeline_mode<synchronous>, transform_indices = @transform_3, window_bounds = array<i64: 128, 128>}]} {
    %c0_i32 = arith.constant 0 : i32
    %0 = arith.cmpi eq, %arg0, %c0_i32 : i32
    %1 = arith.extui %0 : i1 to i32
    %c0_i32_0 = arith.constant 0 : i32
    %2 = arith.cmpi ne, %1, %c0_i32_0 : i32
    scf.if %2 {
      %cst_14 = arith.constant 0.000000e+00 : f32
      %28 = vector.broadcast %cst_14 : f32 to vector<128x128xf32>
      %c0_15 = arith.constant 0 : index
      %c0_16 = arith.constant 0 : index
      %29 = vector.load %arg4[%c0_15, %c0_16] : memref<128x128xf32, #tpu.memory_space<vmem>>, vector<128x128xf32>
      tpu.vector_store %arg4[%c0_15, %c0_16], %28 {strides = array<i32>} : memref<128x128xf32, #tpu.memory_space<vmem>>, vector<128x128xf32>,
    } else {
    }
    %c0 = arith.constant 0 : index
    %c0_1 = arith.constant 0 : index
    %3 = vector.load %arg1[%c0, %c0_1] : memref<16x32xbf16, #tpu.memory_space<vmem>>, vector<16x32xbf16>
    %c0_2 = arith.constant 0 : index
    %c0_3 = arith.constant 0 : index
    %4 = vector.load %arg2[%c0_2, %c0_3] : memref<32x256xbf16, #tpu.memory_space<vmem>>, vector<32x256xbf16>
    %cst = arith.constant dense<0.000000e+00> : vector<16x256xf32>
    %5 = tpu.matmul %3, %4, %cst {dimension_numbers = #tpu.dot_dimension_numbers<[1], [0], [0], [1], [0, 0, 1, 1], [], []>} : vector<16x32xbf16>, vector<32x256xbf16>, vector<16x256xf32> -> vector<16x256xf32>
    %c0_4 = arith.constant 0 : index
    %c0_5 = arith.constant 0 : index
    %6 = vector.load %arg3[%c0_4, %c0_5] : memref<1x256xf32, #tpu.memory_space<vmem>>, vector<1x256xf32>
    %7 = vector.broadcast %6 : vector<1x256xf32> to vector<16x256xf32>
    %8 = arith.addf %5, %7 : vector<16x256xf32>
    %c16_i32 = arith.constant 16 : i32
    %9 = arith.muli %arg0, %c16_i32 : i32
    %10 = tpu.iota {dimensions = array<i32: 0>} : vector<16x1xi32>
    %11 = vector.broadcast %9 : i32 to vector<16x1xi32>
    %12 = arith.addi %11, %10 : vector<16x1xi32>
    %c8_i32 = arith.constant 8 : i32
    %13 = vector.broadcast %c8_i32 : i32 to vector<16x1xi32>
    %14 = arith.cmpi slt, %12, %13 : vector<16x1xi32>
    %cst_6 = arith.constant 0.000000e+00 : f32
    %15 = vector.shape_cast %14 : vector<16x1xi1> to vector<16x1xi1>
    %16 = vector.broadcast %15 : vector<16x1xi1> to vector<16x256xi1>
    %17 = vector.broadcast %cst_6 : f32 to vector<16x256xf32>
    %18 = arith.select %16, %8, %17 : vector<16x256xi1>, vector<16x256xf32>
    %19 = vector.extract_strided_slice %18 {offsets = [0, 0], sizes = [16, 128], strides = [1, 1]} : vector<16x256xf32> to vector<16x128xf32>
    %20 = vector.extract_strided_slice %18 {offsets = [0, 128], sizes = [16, 128], strides = [1, 1]} : vector<16x256xf32> to vector<16x128xf32>
    %c0_7 = arith.constant 0 : index
    %c0_8 = arith.constant 0 : index
    %21 = vector.load %arg4[%c0_7, %c0_8] : memref<128x128xf32, #tpu.memory_space<vmem>>, vector<128x128xf32>
    %cst_9 = arith.constant dense<0.000000e+00> : vector<128x128xf32>
    %22 = tpu.matmul %19, %20, %cst_9 {dimension_numbers = #tpu.dot_dimension_numbers<[0], [0], [1], [1], [0, 1, 1, 1], [], []>} : vector<16x128xf32>, vector<16x128xf32>, vector<128x128xf32> -> vector<128x128xf32>
    %23 = arith.addf %21, %22 : vector<128x128xf32>
    %c0_10 = arith.constant 0 : index
    %c0_11 = arith.constant 0 : index
    %24 = vector.load %arg4[%c0_10, %c0_11] : memref<128x128xf32, #tpu.memory_space<vmem>>, vector<128x128xf32>
    tpu.vector_store %arg4[%c0_10, %c0_11], %23 {strides = array<i32>} : memref<128x128xf32, #tpu.memory_space<vmem>>, vector<128x128xf32>,
    %c0_i32_12 = arith.constant 0 : i32
    %25 = arith.cmpi eq, %arg0, %c0_i32_12 : i32
    %26 = arith.extui %25 : i1 to i32
    %c0_i32_13 = arith.constant 0 : i32
    %27 = arith.cmpi ne, %26, %c0_i32_13 : i32
    scf.if %27 {
      %c0_14 = arith.constant 0 : index
      %c0_15 = arith.constant 0 : index
      %28 = vector.load %arg4[%c0_14, %c0_15] : memref<128x128xf32, #tpu.memory_space<vmem>>, vector<128x128xf32>
      %cst_16 = arith.constant 2.500000e-01 : f32
      %29 = vector.broadcast %cst_16 : f32 to vector<128x128xf32>
      %30 = arith.mulf %28, %29 : vector<128x128xf32>
      %31 = tpu.iota {dimensions = array<i32: 0>} : vector<128x128xi32>
      %c16_i32_17 = arith.constant 16 : i32
      %32 = vector.broadcast %c16_i32_17 : i32 to vector<128x128xi32>
      %33 = arith.cmpi slt, %31, %32 : vector<128x128xi32>
      %cst_18 = arith.constant 0xFF800000 : f32
      %34 = vector.broadcast %cst_18 : f32 to vector<128x128xf32>
      %35 = arith.select %33, %30, %34 : vector<128x128xi1>, vector<128x128xf32>
      %cst_19 = arith.constant dense<0xFF800000> : vector<128xf32>
      %36 = vector.multi_reduction <maximumf>, %35, %cst_19 [0] : vector<128x128xf32> to vector<128xf32>
      %37 = vector.shape_cast %36 : vector<128xf32> to vector<1x128xf32>
      %38 = vector.broadcast %37 : vector<1x128xf32> to vector<128x128xf32>
      %39 = arith.subf %35, %38 : vector<128x128xf32>
      %40 = math.exp %39 : vector<128x128xf32>
      %cst_20 = arith.constant dense<0.000000e+00> : vector<128xf32>
      %41 = vector.multi_reduction <add>, %40, %cst_20 [0] : vector<128x128xf32> to vector<128xf32>
      %42 = vector.shape_cast %41 : vector<128xf32> to vector<1x128xf32>
      %43 = tpu.reciprocal %42 {approx = true} : vector<1x128xf32> -> vector<1x128xf32>
      %44 = vector.broadcast %43 : vector<1x128xf32> to vector<128x128xf32>
      %45 = arith.mulf %40, %44 : vector<128x128xf32>
      %c0_21 = arith.constant 0 : index
      %c0_22 = arith.constant 0 : index
      %46 = vector.load %arg4[%c0_21, %c0_22] : memref<128x128xf32, #tpu.memory_space<vmem>>, vector<128x128xf32>
      tpu.vector_store %arg4[%c0_21, %c0_22], %45 {strides = array<i32>} : memref<128x128xf32, #tpu.memory_space<vmem>>, vector<128x128xf32>,
    } else {
    }
    return
  }
  func.func @transform_0(%arg0: i32) -> (i32, i32) {
    %c0_i32 = arith.constant 0 : i32
    %c0_i32_0 = arith.constant 0 : i32
    return %arg0, %c0_i32 : i32, i32
  }
  func.func @transform_1(%arg0: i32) -> (i32, i32) {
    %c0_i32 = arith.constant 0 : i32
    %c0_i32_0 = arith.constant 0 : i32
    %c0_i32_1 = arith.constant 0 : i32
    return %c0_i32, %c0_i32_0 : i32, i32
  }
  func.func @transform_2(%arg0: i32) -> (i32, i32) {
    %c0_i32 = arith.constant 0 : i32
    %c0_i32_0 = arith.constant 0 : i32
    %c0_i32_1 = arith.constant 0 : i32
    return %c0_i32, %c0_i32_0 : i32, i32
  }
  func.func @transform_3(%arg0: i32) -> (i32, i32) {
    %c0_i32 = arith.constant 0 : i32
    %c0_i32_0 = arith.constant 0 : i32
    %c0_i32_1 = arith.constant 0 : i32
    return %c0_i32, %c0_i32_0 : i32, i32
  }
}

</mosaic_0001>

<llo_original>
// kernel: tpu_custom_call.1
$region0: #{tpu_custom_call.1}
  #allocation0 [shape = 'u32[]', space=smem, size = 0x4, offset = 0x4, fixed_abs, tag = 'smem constant byte address 0x4 - core index']
  #allocation1 [shape = 'u32[144,128]{1,0:T(1,128)}', space=vmem, size = 0x12000, scoped, tag = 'internal scratch']
  %s0 = inlined_call_operand.hbm [shape: bf16[16,32], index: 0, kind: input, shape index: {}]
  %s1 = inlined_call_operand.hbm [shape: bf16[32,256], index: 1, kind: input, shape index: {}]
  %s2 = inlined_call_operand.vmem [shape: f32[1,256], index: 2, kind: input, shape index: {}]
  %s3 = inlined_call_operand.hbm [shape: f32[128,128], index: 3, kind: output, shape index: {}]
  %s4 = sld [smem:[#allocation0]]
  $region38: #{tpu_custom_call.1} parent=0
    _
  %s6 = ssub.s32 1, %s4
  %s7 = scalar_select 0, %s6, %s4
  $region1: #{tpu_custom_call.1} parent=0
    #allocation2 [shape = 'u8[4096]{0}', space=vmem, size = 0x1000, scoped, tag = 'input window, operand 0, single buffered']
    #allocation3 [shape = 's32[1]{0}', space=sflag, size = 0x4, scoped, tag = 'scoped memory for tpu_custom_call.1']
    #allocation4 [shape = 's32[1]{0}', space=sflag, size = 0x4, scoped, tag = 'scoped memory for tpu_custom_call.1']
    #allocation5 [shape = 'u8[16384]{0}', space=vmem, size = 0x4000, scoped, tag = 'input window, operand 1, single buffered']
    #allocation6 [shape = 's32[1]{0}', space=sflag, size = 0x4, scoped, tag = 'scoped memory for tpu_custom_call.1']
    #allocation7 [shape = 'u8[65536]{0}', space=vmem, size = 0x10000, scoped, tag = 'output window, operand 0, single buffered']
    %8 = vsyncpa [#allocation3], 0
    %9 = vsyncpa [#allocation6], 0
    %10 = vsyncpa [#allocation4], 0
    // Predicated region
    $region2: #{tpu_custom_call.1} parent=1 // pred_check
      _
    $region3: #{tpu_custom_call.1} parent=1 // pred_check_branch
      %12 = sbr.rel (0) target = $region5
    $region4: #{tpu_custom_call.1} parent=1 // pred_region
      %s14 = ssub.s32 128, 128
      %15 = vsyncadd [#allocation3], %s14
      %s16 = sshll.u32 [#allocation2], 4
      %s17 = int_to_ptr.vmem [resolvable:$true] %s16
      %22 = dma.hbm_to_vmem [thread:$0]  %s0, 128, %s17, [#allocation3], 64, 64, 4
    $region5: #{tpu_custom_call.1} parent=1 // pred_fallthru
      _
    // Predicated region
    $region6: #{tpu_custom_call.1} parent=1 // pred_check
      _
    $region7: #{tpu_custom_call.1} parent=1 // pred_check_branch
      %24 = sbr.rel (0) target = $region9
    $region8: #{tpu_custom_call.1} parent=1 // pred_region
      %s26 = ssub.s32 512, 512
      %27 = vsyncadd [#allocation6], %s26
      %s28 = sshll.u32 [#allocation5], 4
      %s29 = int_to_ptr.vmem [resolvable:$true] %s28
      %34 = dma.hbm_to_vmem [thread:$0]  %s1, 512, %s29, [#allocation6], 128, 128, 8
    $region9: #{tpu_custom_call.1} parent=1 // pred_fallthru
      _
    // Predicated region
    $region10: #{tpu_custom_call.1} parent=1 // pred_check
      _
    $region11: #{tpu_custom_call.1} parent=1 // pred_check_branch
      %36 = sbr.rel (0) target = $region13
    $region12: #{tpu_custom_call.1} parent=1 // pred_region
      _
    $region13: #{tpu_custom_call.1} parent=1 // pred_fallthru
      _
    // Predicated region
    $region14: #{tpu_custom_call.1} parent=1 // pred_check
      _
    $region15: #{tpu_custom_call.1} parent=1 // pred_check_branch
      %38 = sbr.rel (0) target = $region17
    $region16: #{tpu_custom_call.1} parent=1 // pred_region
      %39 = dma.done [#allocation3], 128
    $region17: #{tpu_custom_call.1} parent=1 // pred_fallthru
      _
    // Predicated region
    $region18: #{tpu_custom_call.1} parent=1 // pred_check
      _
    $region19: #{tpu_custom_call.1} parent=1 // pred_check_branch
      %41 = sbr.rel (0) target = $region21
    $region20: #{tpu_custom_call.1} parent=1 // pred_region
      %42 = dma.done [#allocation6], 512
    $region21: #{tpu_custom_call.1} parent=1 // pred_fallthru
      _
    %p44 = scmp.eq.s32.totalorder 0, 0
    // Predicated region
    $region22: #{tpu_custom_call.1} parent=1 // pred_check
      %p45 = pneg %p44
    $region23: #{tpu_custom_call.1} parent=1 // pred_check_branch
      %47 = sbr.rel (%p45) target = $region25
    $region24: #{tpu_custom_call.1} parent=1 // pred_region
      %48 = vst [vmem:[#allocation7] sm:$0xff] 0.0
      %49 = vst [vmem:[#allocation7 + $0x8] sm:$0xff] 0.0
      %50 = vst [vmem:[#allocation7 + $0x10] sm:$0xff] 0.0
      %51 = vst [vmem:[#allocation7 + $0x18] sm:$0xff] 0.0
      %52 = vst [vmem:[#allocation7 + $0x20] sm:$0xff] 0.0
      %53 = vst [vmem:[#allocation7 + $0x28] sm:$0xff] 0.0
      %54 = vst [vmem:[#allocation7 + $0x30] sm:$0xff] 0.0
      %55 = vst [vmem:[#allocation7 + $0x38] sm:$0xff] 0.0
      %56 = vst [vmem:[#allocation7 + $0x40] sm:$0xff] 0.0
      %57 = vst [vmem:[#allocation7 + $0x48] sm:$0xff] 0.0
      %58 = vst [vmem:[#allocation7 + $0x50] sm:$0xff] 0.0
      %59 = vst [vmem:[#allocation7 + $0x58] sm:$0xff] 0.0
      %60 = vst [vmem:[#allocation7 + $0x60] sm:$0xff] 0.0
      %61 = vst [vmem:[#allocation7 + $0x68] sm:$0xff] 0.0
      %62 = vst [vmem:[#allocation7 + $0x70] sm:$0xff] 0.0
      %63 = vst [vmem:[#allocation7 + $0x78] sm:$0xff] 0.0
    $region25: #{tpu_custom_call.1} parent=1 // pred_fallthru
      _
    %v64 = vld [vmem:[#allocation2] sm:$0xf]
    %v65 = vld [vmem:[#allocation2 + $0x4] sm:$0xf]
    %v66 = vld [vmem:[#allocation5] sm:$0xff]
    %v67 = vld [vmem:[#allocation5 + $0x8] sm:$0xff]
    %v68 = vld [vmem:[#allocation5 + $0x10] sm:$0xff]
    %v69 = vld [vmem:[#allocation5 + $0x18] sm:$0xff]
    %v70 = vld [vmem:[%s2] sm:$0x3]
    %v72 = vlaneseq
    %v73 = vshrl.u32 %v72, 7
    %v74 = vsub.s32 0, %v73
    %v75 = vrot.slane %v70, %v74
    %v76 = vlaneseq
    %v77 = vshrl.u32 %v76, 7
    %v78 = vsub.s32 1, %v77
    %v79 = vrot.slane %v70, %v78
    %v84 = vunpack.c.l.b16 %v64
    %v85 = vunpack.c.l.b16 %v65
    %v86 = vpack.c.b16 %v85, %v84
    %v91 = vunpack.c.l.b16 %v66
    %v92 = vunpack.c.h.b16 %v66
    %v93 = vunpack.c.l.b16 %v67
    %v94 = vunpack.c.h.b16 %v67
    %v95 = vunpack.c.l.b16 %v68
    %v96 = vunpack.c.h.b16 %v68
    %v97 = vunpack.c.l.b16 %v69
    %v98 = vunpack.c.h.b16 %v69
    %v99 = vpack.c.b16 %v93, %v91
    %v100 = vpack.c.b16 %v94, %v92
    %v101 = vpack.c.b16 %v97, %v95
    %v102 = vpack.c.b16 %v98, %v96
    %vm107 = vcmask 261120
    %v109 = vsel %vm107, %v86, 0
    %111 = vmatprep.subr.bf16.mxu0 0
    %112 = vmatpush1.bf16.msra.mxu0 0
    %113 = vmatprep.subr.bf16.mxu0 0
    %114 = vmatpush1.bf16.msra.mxu0 0
    %115 = vmatprep.subr.bf16.mxu0 0
    %116 = vmatpush1.bf16.msra.mxu0 0
    %117 = vmatprep.subr.bf16.mxu0 0
    %118 = vmatpush1.bf16.msra.mxu0 0
    %119 = vmatprep.subr.bf16.mxu0 0
    %120 = vmatpush1.bf16.msra.mxu0 0
    %121 = vmatprep.subr.bf16.mxu0 0
    %122 = vmatpush1.bf16.msra.mxu0 0
    %123 = vmatprep.subr.bf16.mxu0 %v102
    %124 = vmatpush1.bf16.msra.mxu0 %v101
    %125 = vmatprep.subr.bf16.mxu0 %v100
    %126 = vmatpush1.bf16.msra.mxu0 %v99
    %127 = vmatprep.subr.bf16.mxu0 0
    %128 = vmatpush2.bf16.msra.mxu0 0
    %129 = vmatprep.subr.bf16.mxu0 0
    %130 = vmatpush2.bf16.msra.mxu0 0
    %131 = vmatprep.subr.bf16.mxu0 0
    %132 = vmatpush2.bf16.msra.mxu0 0
    %133 = vmatprep.subr.bf16.mxu0 0
    %134 = vmatpush2.bf16.msra.mxu0 0
    %135 = vmatprep.subr.bf16.mxu0 0
    %136 = vmatpush2.bf16.msra.mxu0 0
    %137 = vmatprep.subr.bf16.mxu0 0
    %138 = vmatpush2.bf16.msra.mxu0 0
    %139 = vmatprep.subr.bf16.mxu0 0
    %140 = vmatpush2.bf16.msra.mxu0 0
    %141 = vmatprep.subr.bf16.mxu0 0
    %142 = vmatpush2.bf16.msra.mxu0 0
    %143 = vmatprep.mubr.bf16.mxu0 0
    %144 = vmatmul.mubr.bf16.gmra.mxu0 %v109
    %v145 = vpop.f32.mrf.mxu0
    %v146 = vadd.f32 %v75, %v145
    %v147 = vpop.f32.mrf.mxu0
    %v148 = vadd.f32 %v79, %v147
    %v149 = vpop.f32.mrf.mxu0
    %v150 = vadd.f32 %v75, %v149
    %v151 = vpop.f32.mrf.mxu0
    %v152 = vadd.f32 %v79, %v151
    %153 = vdwg.mxu0
    %s154 = smul.u32 0, 16
    %v155 = vlaneseq
    %v156 = vshrl.u32 %v155, 7
    %v157 = vadd.s32 %v156, 8
    %v158 = vstv %s154
    %v159 = vadd.s32 %v158, %v156
    %v160 = vadd.s32 %v158, %v157
    %vm161 = vcmp.lt.s32.totalorder %v159, 8
    %vm162 = vcmp.lt.s32.totalorder %v160, 8
    %v163 = vsel %vm161, 1, 0
    %v164 = vsel %vm162, 1, 0
    %vm165 = vcmp.eq.s32.totalorder %v163, 1
    %vm166 = vcmp.eq.s32.totalorder %v164, 1
    %v167 = vsel %vm165, %v146, 0.0
    %v168 = vsel %vm165, %v148, 0.0
    %v169 = vsel %vm166, %v150, 0.0
    %v170 = vsel %vm166, %v152, 0.0
    %v171 = vld [vmem:[#allocation7] sm:$0xff]
    %v172 = vld [vmem:[#allocation7 + $0x8] sm:$0xff]
    %v173 = vld [vmem:[#allocation7 + $0x10] sm:$0xff]
    %v174 = vld [vmem:[#allocation7 + $0x18] sm:$0xff]
    %v175 = vld [vmem:[#allocation7 + $0x20] sm:$0xff]
    %v176 = vld [vmem:[#allocation7 + $0x28] sm:$0xff]
    %v177 = vld [vmem:[#allocation7 + $0x30] sm:$0xff]
    %v178 = vld [vmem:[#allocation7 + $0x38] sm:$0xff]
    %v179 = vld [vmem:[#allocation7 + $0x40] sm:$0xff]
    %v180 = vld [vmem:[#allocation7 + $0x48] sm:$0xff]
    %v181 = vld [vmem:[#allocation7 + $0x50] sm:$0xff]
    %v182 = vld [vmem:[#allocation7 + $0x58] sm:$0xff]
    %v183 = vld [vmem:[#allocation7 + $0x60] sm:$0xff]
    %v184 = vld [vmem:[#allocation7 + $0x68] sm:$0xff]
    %v185 = vld [vmem:[#allocation7 + $0x70] sm:$0xff]
    %v186 = vld [vmem:[#allocation7 + $0x78] sm:$0xff]
    %187 = vxpose.xlu0.b32.start [1/16] %v167, 128
    %188 = vxpose.xlu0.b32.cont [2/16] %v169, 128
    %189 = vxpose.xlu0.b32.cont [3/16] 0.0, 128
    %190 = vxpose.xlu0.b32.cont [4/16] 0.0, 128
    %191 = vxpose.xlu0.b32.cont [5/16] 0.0, 128
    %192 = vxpose.xlu0.b32.cont [6/16] 0.0, 128
    %193 = vxpose.xlu0.b32.cont [7/16] 0.0, 128
    %194 = vxpose.xlu0.b32.cont [8/16] 0.0, 128
    %195 = vxpose.xlu0.b32.cont [9/16] 0.0, 128
    %196 = vxpose.xlu0.b32.cont [10/16] 0.0, 128
    %197 = vxpose.xlu0.b32.cont [11/16] 0.0, 128
    %198 = vxpose.xlu0.b32.cont [12/16] 0.0, 128
    %199 = vxpose.xlu0.b32.cont [13/16] 0.0, 128
    %200 = vxpose.xlu0.b32.cont [14/16] 0.0, 128
    %201 = vxpose.xlu0.b32.cont [15/16] 0.0, 128
    %202 = vxpose.xlu0.b32.end [16/16] 0.0, 128
    %v203 = vpop.trf.xlu0
    %v204 = vpop.trf.xlu0
    %v205 = vpop.trf.xlu0
    %v206 = vpop.trf.xlu0
    %v207 = vpop.trf.xlu0
    %v208 = vpop.trf.xlu0
    %v209 = vpop.trf.xlu0
    %v210 = vpop.trf.xlu0
    %v211 = vpop.trf.xlu0
    %v212 = vpop.trf.xlu0
    %v213 = vpop.trf.xlu0
    %v214 = vpop.trf.xlu0
    %v215 = vpop.trf.xlu0
    %v216 = vpop.trf.xlu0
    %v217 = vpop.trf.xlu0
    %v218 = vpop.trf.xlu0
    %vm219 = vcmask 130048
    %v221 = vsel %vm219, %v203, 0
    %v224 = vsel %vm219, %v204, 0
    %v227 = vsel %vm219, %v205, 0
    %v230 = vsel %vm219, %v206, 0
    %v233 = vsel %vm219, %v207, 0
    %v236 = vsel %vm219, %v208, 0
    %v239 = vsel %vm219, %v209, 0
    %v242 = vsel %vm219, %v210, 0
    %v245 = vsel %vm219, %v211, 0
    %v248 = vsel %vm219, %v212, 0
    %v251 = vsel %vm219, %v213, 0
    %v254 = vsel %vm219, %v214, 0
    %v257 = vsel %vm219, %v215, 0
    %v260 = vsel %vm219, %v216, 0
    %v263 = vsel %vm219, %v217, 0
    %v266 = vsel %vm219, %v218, 0
    %268 = vmatprep.subr.mxu0 0.0
    %269 = vmatpush1.msra.mxu0 0.0
    %270 = vmatprep.subr.mxu0 0.0
    %271 = vmatpush1.msra.mxu0 0.0
    %272 = vmatprep.subr.mxu0 0.0
    %273 = vmatpush1.msra.mxu0 0.0
    %274 = vmatprep.subr.mxu0 0.0
    %275 = vmatpush1.msra.mxu0 0.0
    %276 = vmatprep.subr.mxu0 0.0
    %277 = vmatpush1.msra.mxu0 0.0
    %278 = vmatprep.subr.mxu0 0.0
    %279 = vmatpush1.msra.mxu0 0.0
    %280 = vmatprep.subr.mxu0 0.0
    %281 = vmatpush1.msra.mxu0 0.0
    %282 = vmatprep.subr.mxu0 0.0
    %283 = vmatpush1.msra.mxu0 0.0
    %284 = vmatprep.subr.mxu0 0.0
    %285 = vmatpush1.msra.mxu0 0.0
    %286 = vmatprep.subr.mxu0 0.0
    %287 = vmatpush1.msra.mxu0 0.0
    %288 = vmatprep.subr.mxu0 0.0
    %289 = vmatpush1.msra.mxu0 0.0
    %290 = vmatprep.subr.mxu0 0.0
    %291 = vmatpush1.msra.mxu0 0.0
    %292 = vmatprep.subr.mxu0 0.0
    %293 = vmatpush1.msra.mxu0 0.0
    %294 = vmatprep.subr.mxu0 0.0
    %295 = vmatpush1.msra.mxu0 0.0
    %296 = vmatprep.subr.mxu0 0.0
    %297 = vmatpush1.msra.mxu0 %v170
    %298 = vmatprep.subr.mxu0 0.0
    %299 = vmatpush1.msra.mxu0 %v168
    %300 = vmatprep.subr.mxu0 0.0
    %301 = vmatpush2.msra.mxu0 0.0
    %302 = vmatprep.subr.mxu0 0.0
    %303 = vmatpush2.msra.mxu0 0.0
    %304 = vmatprep.subr.mxu0 0.0
    %305 = vmatpush2.msra.mxu0 0.0
    %306 = vmatprep.subr.mxu0 0.0
    %307 = vmatpush2.msra.mxu0 0.0
    %308 = vmatprep.subr.mxu0 0.0
    %309 = vmatpush2.msra.mxu0 0.0
    %310 = vmatprep.subr.mxu0 0.0
    %311 = vmatpush2.msra.mxu0 0.0
    %312 = vmatprep.subr.mxu0 0.0
    %313 = vmatpush2.msra.mxu0 0.0
    %314 = vmatprep.subr.mxu0 0.0
    %315 = vmatpush2.msra.mxu0 0.0
    %316 = vmatprep.subr.mxu0 0.0
    %317 = vmatpush2.msra.mxu0 0.0
    %318 = vmatprep.subr.mxu0 0.0
    %319 = vmatpush2.msra.mxu0 0.0
    %320 = vmatprep.subr.mxu0 0.0
    %321 = vmatpush2.msra.mxu0 0.0
    %322 = vmatprep.subr.mxu0 0.0
    %323 = vmatpush2.msra.mxu0 0.0
    %324 = vmatprep.subr.mxu0 0.0
    %325 = vmatpush2.msra.mxu0 0.0
    %326 = vmatprep.subr.mxu0 0.0
    %327 = vmatpush2.msra.mxu0 0.0
    %328 = vmatprep.subr.mxu0 0.0
    %329 = vmatpush2.msra.mxu0 0.0
    %330 = vmatprep.subr.mxu0 0.0
    %331 = vmatpush2.msra.mxu0 0.0
    %332 = vmatprep.mubr.f32.mxu0 0.0
    %333 = vmatmul.mubr.f32.gmra.mxu0 %v221
    %v334 = vpop.f32.mrf.mxu0
    %v335 = vadd.f32 0.0, %v334
    %v336 = vpop.f32.mrf.mxu0
    %337 = vmatprep.mubr.f32.mxu0 0.0
    %338 = vmatmul.mubr.f32.gmra.mxu0 %v224
    %v339 = vpop.f32.mrf.mxu0
    %v340 = vadd.f32 0.0, %v339
    %v341 = vpop.f32.mrf.mxu0
    %342 = vmatprep.mubr.f32.mxu0 0.0
    %343 = vmatmul.mubr.f32.gmra.mxu0 %v227
    %v344 = vpop.f32.mrf.mxu0
    %v345 = vadd.f32 0.0, %v344
    %v346 = vpop.f32.mrf.mxu0
    %347 = vmatprep.mubr.f32.mxu0 0.0
    %348 = vmatmul.mubr.f32.gmra.mxu0 %v230
    %v349 = vpop.f32.mrf.mxu0
    %v350 = vadd.f32 0.0, %v349
    %v351 = vpop.f32.mrf.mxu0
    %352 = vmatprep.mubr.f32.mxu0 0.0
    %353 = vmatmul.mubr.f32.gmra.mxu0 %v233
    %v354 = vpop.f32.mrf.mxu0
    %v355 = vadd.f32 0.0, %v354
    %v356 = vpop.f32.mrf.mxu0
    %357 = vmatprep.mubr.f32.mxu0 0.0
    %358 = vmatmul.mubr.f32.gmra.mxu0 %v236
    %v359 = vpop.f32.mrf.mxu0
    %v360 = vadd.f32 0.0, %v359
    %v361 = vpop.f32.mrf.mxu0
    %362 = vmatprep.mubr.f32.mxu0 0.0
    %363 = vmatmul.mubr.f32.gmra.mxu0 %v239
    %v364 = vpop.f32.mrf.mxu0
    %v365 = vadd.f32 0.0, %v364
    %v366 = vpop.f32.mrf.mxu0
    %367 = vmatprep.mubr.f32.mxu0 0.0
    %368 = vmatmul.mubr.f32.gmra.mxu0 %v242
    %v369 = vpop.f32.mrf.mxu0
    %v370 = vadd.f32 0.0, %v369
    %v371 = vpop.f32.mrf.mxu0
    %372 = vmatprep.mubr.f32.mxu0 0.0
    %373 = vmatmul.mubr.f32.gmra.mxu0 %v245
    %v374 = vpop.f32.mrf.mxu0
    %v375 = vadd.f32 0.0, %v374
    %v376 = vpop.f32.mrf.mxu0
    %377 = vmatprep.mubr.f32.mxu0 0.0
    %378 = vmatmul.mubr.f32.gmra.mxu0 %v248
    %v379 = vpop.f32.mrf.mxu0
    %v380 = vadd.f32 0.0, %v379
    %v381 = vpop.f32.mrf.mxu0
    %382 = vmatprep.mubr.f32.mxu0 0.0
    %383 = vmatmul.mubr.f32.gmra.mxu0 %v251
    %v384 = vpop.f32.mrf.mxu0
    %v385 = vadd.f32 0.0, %v384
    %v386 = vpop.f32.mrf.mxu0
    %387 = vmatprep.mubr.f32.mxu0 0.0
    %388 = vmatmul.mubr.f32.gmra.mxu0 %v254
    %v389 = vpop.f32.mrf.mxu0
    %v390 = vadd.f32 0.0, %v389
    %v391 = vpop.f32.mrf.mxu0
    %392 = vmatprep.mubr.f32.mxu0 0.0
    %393 = vmatmul.mubr.f32.gmra.mxu0 %v257
    %v394 = vpop.f32.mrf.mxu0
    %v395 = vadd.f32 0.0, %v394
    %v396 = vpop.f32.mrf.mxu0
    %397 = vmatprep.mubr.f32.mxu0 0.0
    %398 = vmatmul.mubr.f32.gmra.mxu0 %v260
    %v399 = vpop.f32.mrf.mxu0
    %v400 = vadd.f32 0.0, %v399
    %v401 = vpop.f32.mrf.mxu0
    %402 = vmatprep.mubr.f32.mxu0 0.0
    %403 = vmatmul.mubr.f32.gmra.mxu0 %v263
    %v404 = vpop.f32.mrf.mxu0
    %v405 = vadd.f32 0.0, %v404
    %v406 = vpop.f32.mrf.mxu0
    %407 = vmatprep.mubr.f32.mxu0 0.0
    %408 = vmatmul.mubr.f32.gmra.mxu0 %v266
    %v409 = vpop.f32.mrf.mxu0
    %v410 = vadd.f32 0.0, %v409
    %v411 = vpop.f32.mrf.mxu0
    %412 = vdwg.mxu0
    %v413 = vadd.f32 %v171, %v335
    %v414 = vadd.f32 %v172, %v340
    %v415 = vadd.f32 %v173, %v345
    %v416 = vadd.f32 %v174, %v350
    %v417 = vadd.f32 %v175, %v355
    %v418 = vadd.f32 %v176, %v360
    %v419 = vadd.f32 %v177, %v365
    %v420 = vadd.f32 %v178, %v370
    %v421 = vadd.f32 %v179, %v375
    %v422 = vadd.f32 %v180, %v380
    %v423 = vadd.f32 %v181, %v385
    %v424 = vadd.f32 %v182, %v390
    %v425 = vadd.f32 %v183, %v395
    %v426 = vadd.f32 %v184, %v400
    %v427 = vadd.f32 %v185, %v405
    %v428 = vadd.f32 %v186, %v410
    %429 = vst [vmem:[#allocation7] sm:$0xff] %v413
    %430 = vst [vmem:[#allocation7 + $0x8] sm:$0xff] %v414
    %431 = vst [vmem:[#allocation7 + $0x10] sm:$0xff] %v415
    %432 = vst [vmem:[#allocation7 + $0x18] sm:$0xff] %v416
    %433 = vst [vmem:[#allocation7 + $0x20] sm:$0xff] %v417
    %434 = vst [vmem:[#allocation7 + $0x28] sm:$0xff] %v418
    %435 = vst [vmem:[#allocation7 + $0x30] sm:$0xff] %v419
    %436 = vst [vmem:[#allocation7 + $0x38] sm:$0xff] %v420
    %437 = vst [vmem:[#allocation7 + $0x40] sm:$0xff] %v421
    %438 = vst [vmem:[#allocation7 + $0x48] sm:$0xff] %v422
    %439 = vst [vmem:[#allocation7 + $0x50] sm:$0xff] %v423
    %440 = vst [vmem:[#allocation7 + $0x58] sm:$0xff] %v424
    %441 = vst [vmem:[#allocation7 + $0x60] sm:$0xff] %v425
    %442 = vst [vmem:[#allocation7 + $0x68] sm:$0xff] %v426
    %443 = vst [vmem:[#allocation7 + $0x70] sm:$0xff] %v427
    %444 = vst [vmem:[#allocation7 + $0x78] sm:$0xff] %v428
    // Predicated region
    $region26: #{tpu_custom_call.1} parent=1 // pred_check
      %p445 = pneg %p44
    $region27: #{tpu_custom_call.1} parent=1 // pred_check_branch
      %447 = sbr.rel (%p445) target = $region29
    $region28: #{tpu_custom_call.1} parent=1 // pred_region
      %v448 = vld [vmem:[#allocation7] sm:$0xff]
      %v449 = vld [vmem:[#allocation7 + $0x8] sm:$0xff]
      %v450 = vld [vmem:[#allocation7 + $0x10] sm:$0xff]
      %v451 = vld [vmem:[#allocation7 + $0x18] sm:$0xff]
      %v452 = vld [vmem:[#allocation7 + $0x20] sm:$0xff]
      %v453 = vld [vmem:[#allocation7 + $0x28] sm:$0xff]
      %v454 = vld [vmem:[#allocation7 + $0x30] sm:$0xff]
      %v455 = vld [vmem:[#allocation7 + $0x38] sm:$0xff]
      %v456 = vld [vmem:[#allocation7 + $0x40] sm:$0xff]
      %v457 = vld [vmem:[#allocation7 + $0x48] sm:$0xff]
      %v458 = vld [vmem:[#allocation7 + $0x50] sm:$0xff]
      %v459 = vld [vmem:[#allocation7 + $0x58] sm:$0xff]
      %v460 = vld [vmem:[#allocation7 + $0x60] sm:$0xff]
      %v461 = vld [vmem:[#allocation7 + $0x68] sm:$0xff]
      %v462 = vld [vmem:[#allocation7 + $0x70] sm:$0xff]
      %v463 = vld [vmem:[#allocation7 + $0x78] sm:$0xff]
      %v464 = vmul.f32 %v448, 0.25
      %v465 = vmul.f32 %v449, 0.25
      %v466 = vmul.f32 %v450, 0.25
      %v467 = vmul.f32 %v451, 0.25
      %v468 = vmul.f32 %v452, 0.25
      %v469 = vmul.f32 %v453, 0.25
      %v470 = vmul.f32 %v454, 0.25
      %v471 = vmul.f32 %v455, 0.25
      %v472 = vmul.f32 %v456, 0.25
      %v473 = vmul.f32 %v457, 0.25
      %v474 = vmul.f32 %v458, 0.25
      %v475 = vmul.f32 %v459, 0.25
      %v476 = vmul.f32 %v460, 0.25
      %v477 = vmul.f32 %v461, 0.25
      %v478 = vmul.f32 %v462, 0.25
      %v479 = vmul.f32 %v463, 0.25
      %v480 = vadd.s32 %v156, 16
      %v481 = vadd.s32 %v156, 24
      %v482 = vadd.s32 %v156, 32
      %v483 = vadd.s32 %v156, 40
      %v484 = vadd.s32 %v156, 48
      %v485 = vadd.s32 %v156, 56
      %v486 = vadd.s32 %v156, 64
      %v487 = vadd.s32 %v156, 72
      %v488 = vadd.s32 %v156, 80
      %v489 = vadd.s32 %v156, 88
      %v490 = vadd.s32 %v156, 96
      %v491 = vadd.s32 %v156, 104
      %v492 = vadd.s32 %v156, 112
      %v493 = vadd.s32 %v156, 120
      %vm494 = vcmp.lt.s32.totalorder %v156, 16
      %vm495 = vcmp.lt.s32.totalorder %v157, 16
      %vm496 = vcmp.lt.s32.totalorder %v480, 16
      %vm497 = vcmp.lt.s32.totalorder %v481, 16
      %vm498 = vcmp.lt.s32.totalorder %v482, 16
      %vm499 = vcmp.lt.s32.totalorder %v483, 16
      %vm500 = vcmp.lt.s32.totalorder %v484, 16
      %vm501 = vcmp.lt.s32.totalorder %v485, 16
      %vm502 = vcmp.lt.s32.totalorder %v486, 16
      %vm503 = vcmp.lt.s32.totalorder %v487, 16
      %vm504 = vcmp.lt.s32.totalorder %v488, 16
      %vm505 = vcmp.lt.s32.totalorder %v489, 16
      %vm506 = vcmp.lt.s32.totalorder %v490, 16
      %vm507 = vcmp.lt.s32.totalorder %v491, 16
      %vm508 = vcmp.lt.s32.totalorder %v492, 16
      %vm509 = vcmp.lt.s32.totalorder %v493, 16
      %v510 = vsel %vm494, %v464, -inf
      %v511 = vsel %vm495, %v465, -inf
      %v512 = vsel %vm496, %v466, -inf
      %v513 = vsel %vm497, %v467, -inf
      %v514 = vsel %vm498, %v468, -inf
      %v515 = vsel %vm499, %v469, -inf
      %v516 = vsel %vm500, %v470, -inf
      %v517 = vsel %vm501, %v471, -inf
      %v518 = vsel %vm502, %v472, -inf
      %v519 = vsel %vm503, %v473, -inf
      %v520 = vsel %vm504, %v474, -inf
      %v521 = vsel %vm505, %v475, -inf
      %v522 = vsel %vm506, %v476, -inf
      %v523 = vsel %vm507, %v477, -inf
      %v524 = vsel %vm508, %v478, -inf
      %v525 = vsel %vm509, %v479, -inf
      %v526 = vmax.f32 %v510, %v514
      %v527 = vmax.f32 %v511, %v515
      %v528 = vmax.f32 %v512, %v516
      %v529 = vmax.f32 %v513, %v517
      %v530 = vmax.f32 %v526, %v518
      %v531 = vmax.f32 %v527, %v519
      %v532 = vmax.f32 %v528, %v520
      %v533 = vmax.f32 %v529, %v521
      %v534 = vmax.f32 %v530, %v522
      %v535 = vmax.f32 %v531, %v523
      %v536 = vmax.f32 %v532, %v524
      %v537 = vmax.f32 %v533, %v525
      %v538 = vmax.f32 %v534, %v535
      %v539 = vmax.f32 %v536, %v537
      %v540 = vmax.f32 %v538, %v539
      %v541 = vrot.slane %v540, 4
      %v542 = vmax.f32 %v540, %v541
      %v543 = vrot.slane %v542, 2
      %v544 = vmax.f32 %v542, %v543
      %v545 = vrot.slane %v544, 1
      %v546 = vmax.f32 %v544, %v545
      %v547 = vsub.f32 %v510, %v546
      %v548 = vsub.f32 %v511, %v546
      %v549 = vsub.f32 %v512, %v546
      %v550 = vsub.f32 %v513, %v546
      %v551 = vsub.f32 %v514, %v546
      %v552 = vsub.f32 %v515, %v546
      %v553 = vsub.f32 %v516, %v546
      %v554 = vsub.f32 %v517, %v546
      %v555 = vsub.f32 %v518, %v546
      %v556 = vsub.f32 %v519, %v546
      %v557 = vsub.f32 %v520, %v546
      %v558 = vsub.f32 %v521, %v546
      %v559 = vsub.f32 %v522, %v546
      %v560 = vsub.f32 %v523, %v546
      %v561 = vsub.f32 %v524, %v546
      %v562 = vsub.f32 %v525, %v546
      %v563 = vmul.f32 %v547, 1.442695
      %v564 = vpow.pop %v563
      %v565 = vmul.f32 %v548, 1.442695
      %v566 = vpow.pop %v565
      %v567 = vmul.f32 %v549, 1.442695
      %v568 = vpow.pop %v567
      %v569 = vmul.f32 %v550, 1.442695
      %v570 = vpow.pop %v569
      %v571 = vmul.f32 %v551, 1.442695
      %v572 = vpow.pop %v571
      %v573 = vmul.f32 %v552, 1.442695
      %v574 = vpow.pop %v573
      %v575 = vmul.f32 %v553, 1.442695
      %v576 = vpow.pop %v575
      %v577 = vmul.f32 %v554, 1.442695
      %v578 = vpow.pop %v577
      %v579 = vmul.f32 %v555, 1.442695
      %v580 = vpow.pop %v579
      %v581 = vmul.f32 %v556, 1.442695
      %v582 = vpow.pop %v581
      %v583 = vmul.f32 %v557, 1.442695
      %v584 = vpow.pop %v583
      %v585 = vmul.f32 %v558, 1.442695
      %v586 = vpow.pop %v585
      %v587 = vmul.f32 %v559, 1.442695
      %v588 = vpow.pop %v587
      %v589 = vmul.f32 %v560, 1.442695
      %v590 = vpow.pop %v589
      %v591 = vmul.f32 %v561, 1.442695
      %v592 = vpow.pop %v591
      %v593 = vmul.f32 %v562, 1.442695
      %v594 = vpow.pop %v593
      %v595 = vadd.f32 %v564, %v566
      %v596 = vadd.f32 %v595, %v568
      %v597 = vadd.f32 %v596, %v570
      %v598 = vadd.f32 %v597, %v572
      %v599 = vadd.f32 %v598, %v574
      %v600 = vadd.f32 %v599, %v576
      %v601 = vadd.f32 %v600, %v578
      %v602 = vadd.f32 %v601, %v580
      %v603 = vadd.f32 %v602, %v582
      %v604 = vadd.f32 %v603, %v584
      %v605 = vadd.f32 %v604, %v586
      %v606 = vadd.f32 %v605, %v588
      %v607 = vadd.f32 %v606, %v590
      %v608 = vadd.f32 %v607, %v592
      %v609 = vadd.f32 %v608, %v594
      %v610 = vrot.slane %v609, 4
      %v611 = vadd.f32 %v609, %v610
      %v612 = vrot.slane %v611, 2
      %v613 = vadd.f32 %v611, %v612
      %v614 = vrot.slane %v613, 1
      %v615 = vadd.f32 %v613, %v614
      %v616 = vrcp.pop %v615
      %v617 = vmul.f32 %v564, %v616
      %v618 = vmul.f32 %v566, %v616
      %v619 = vmul.f32 %v568, %v616
      %v620 = vmul.f32 %v570, %v616
      %v621 = vmul.f32 %v572, %v616
      %v622 = vmul.f32 %v574, %v616
      %v623 = vmul.f32 %v576, %v616
      %v624 = vmul.f32 %v578, %v616
      %v625 = vmul.f32 %v580, %v616
      %v626 = vmul.f32 %v582, %v616
      %v627 = vmul.f32 %v584, %v616
      %v628 = vmul.f32 %v586, %v616
      %v629 = vmul.f32 %v588, %v616
      %v630 = vmul.f32 %v590, %v616
      %v631 = vmul.f32 %v592, %v616
      %v632 = vmul.f32 %v594, %v616
      %633 = vst [vmem:[#allocation7] sm:$0xff] %v617
      %634 = vst [vmem:[#allocation7 + $0x8] sm:$0xff] %v618
      %635 = vst [vmem:[#allocation7 + $0x10] sm:$0xff] %v619
      %636 = vst [vmem:[#allocation7 + $0x18] sm:$0xff] %v620
      %637 = vst [vmem:[#allocation7 + $0x20] sm:$0xff] %v621
      %638 = vst [vmem:[#allocation7 + $0x28] sm:$0xff] %v622
      %639 = vst [vmem:[#allocation7 + $0x30] sm:$0xff] %v623
      %640 = vst [vmem:[#allocation7 + $0x38] sm:$0xff] %v624
      %641 = vst [vmem:[#allocation7 + $0x40] sm:$0xff] %v625
      %642 = vst [vmem:[#allocation7 + $0x48] sm:$0xff] %v626
      %643 = vst [vmem:[#allocation7 + $0x50] sm:$0xff] %v627
      %644 = vst [vmem:[#allocation7 + $0x58] sm:$0xff] %v628
      %645 = vst [vmem:[#allocation7 + $0x60] sm:$0xff] %v629
      %646 = vst [vmem:[#allocation7 + $0x68] sm:$0xff] %v630
      %647 = vst [vmem:[#allocation7 + $0x70] sm:$0xff] %v631
      %648 = vst [vmem:[#allocation7 + $0x78] sm:$0xff] %v632
    $region29: #{tpu_custom_call.1} parent=1 // pred_fallthru
      _
    // Predicated region
    $region30: #{tpu_custom_call.1} parent=1 // pred_check
      _
    $region31: #{tpu_custom_call.1} parent=1 // pred_check_branch
      %650 = sbr.rel (0) target = $region33
    $region32: #{tpu_custom_call.1} parent=1 // pred_region
      %s652 = ssub.s32 2048, 2048
      %653 = vsyncadd [#allocation4], %s652
      %s654 = sshll.u32 [#allocation7], 4
      %s655 = int_to_ptr.vmem [resolvable:$true] %s654
      %660 = dma.vmem_to_hbm [thread:$0]  %s655, 2048, %s3, [#allocation4], 128, 128, 8
    $region33: #{tpu_custom_call.1} parent=1 // pred_fallthru
      _
    // Predicated region
    $region34: #{tpu_custom_call.1} parent=1 // pred_check
      _
    $region35: #{tpu_custom_call.1} parent=1 // pred_check_branch
      %662 = sbr.rel (0) target = $region37
    $region36: #{tpu_custom_call.1} parent=1 // pred_region
      %663 = dma.done [#allocation4], 2048
    $region37: #{tpu_custom_call.1} parent=1 // pred_fallthru
      _
    %664 = vsyncpa [#allocation3], 1
    %665 = vsyncpa [#allocation6], 1
    %666 = vsyncpa [#allocation4], 1

</llo_original>
